<compile_context>
chip_gen: v7x
topology: tpu7x:2x2x1
jax: 0.10.0
libtpu: 0.0.40
codegen_flags: <defaults>
</compile_context>

<pallas_src>
import functools

import numpy as np

import jax
import jax.numpy as jnp
from jax import lax
from jax.experimental import pallas as pl
from jax.experimental.pallas import tpu as pltpu

block_size = 8   # max sequence length (tril buffer size in the PyTorch module)
n_embd = 32
head_size = 16

_LANE = 128      # TPU lane width; q/k/v each occupy one lane group of the fused projection


def _head_kernel(x_ref, wqkv_ref, bias_ref, o_ref, *, scale):
    # x_ref:    (N, C)      bf16, N = B*T (batch folded into rows)
    # wqkv_ref: (C, 3*128)  bf16, lane-aligned [K | 0.. | Q | 0.. | V | 0..]
    # bias_ref: (N, N)      f32 additive mask (0 where kept, -1e30 where masked)
    # o_ref:    (N, 128)    f32, cols >= head_size are exactly zero
    x = x_ref[...]
    w = wqkv_ref[...]

    # Single fused projection on the MXU (bf16 in, f32 accumulate), then keep bf16 copies
    # of q/k/v for the subsequent MXU pushes.
    qkv = jnp.dot(x, w, preferred_element_type=jnp.float32).astype(jnp.bfloat16)  # (N, 384)
    k = qkv[:, 0 * _LANE:1 * _LANE]          # (N, 128), lane-group aligned slice
    q = qkv[:, 1 * _LANE:2 * _LANE]          # (N, 128)
    v = qkv[:, 2 * _LANE:3 * _LANE]          # (N, 128), cols >= H are exactly zero

    # Scores: contract the last dims directly (no explicit transpose of k).  The padded
    # zero columns of q and k contribute nothing to the contraction.
    wei = lax.dot_general(q, k, (((1,), (1,)), ((), ())),
                          preferred_element_type=jnp.float32) * scale             # (N, N)

    # Block-diagonal causal mask as a precomputed additive bias (single vadd).
    wei = wei + bias_ref[...]

    # Numerically stable softmax in f32 (diagonal always kept, so rows are never all-masked).
    m = jnp.max(wei, axis=-1, keepdims=True)
    e = jnp.exp(wei - m)
    denom = jnp.sum(e, axis=-1, keepdims=True)
    p = e * pl.reciprocal(denom, approx=True)                                      # EUP recip

    # Output: (N, 128) f32, lane-dense store (cols >= H are zero via the padded V weights).
    out = jnp.dot(p.astype(jnp.bfloat16), v, preferred_element_type=jnp.float32)
    o_ref[...] = out.astype(o_ref.dtype)


def head_forward(x, w_key, w_query, w_value):
    """x: (B, T, C) float32; weights: (head_size, n_embd) PyTorch nn.Linear layout.
    Returns (B, T, head_size)."""
    B, T, C = x.shape
    H = w_key.shape[0]
    N = B * T

    # Lane-aligned fused projection weights, built once outside the kernel.
    w_qkv = jnp.zeros((C, 3 * _LANE), jnp.float32)
    w_qkv = w_qkv.at[:, 0 * _LANE:0 * _LANE + H].set(w_key.T)
    w_qkv = w_qkv.at[:, 1 * _LANE:1 * _LANE + H].set(w_query.T)
    w_qkv = w_qkv.at[:, 2 * _LANE:2 * _LANE + H].set(w_value.T)

    # Fold batch into rows; the kernel restores batch structure via the block-diagonal mask.
    x2d = x.reshape(N, C)

    # Trace-time constant additive causal mask (block-diagonal over the folded batch).
    row = np.arange(N)[:, None]
    col = np.arange(N)[None, :]
    keep = ((row // T) == (col // T)) & (col <= row)
    mask_bias = jnp.asarray(np.where(keep, 0.0, -1e30).astype(np.float32))

    kernel = functools.partial(_head_kernel, scale=float(C) ** -0.5)
    out_padded = pl.pallas_call(
        kernel,
        out_shape=jax.ShapeDtypeStruct((N, _LANE), jnp.float32),
        in_specs=[
            pl.BlockSpec(memory_space=pltpu.MemorySpace.VMEM),   # x (bf16, whole array)
            pl.BlockSpec(memory_space=pltpu.MemorySpace.VMEM),   # fused W_qkv (bf16)
            pl.BlockSpec(memory_space=pltpu.MemorySpace.VMEM),   # additive mask (f32)
        ],
        out_specs=pl.BlockSpec(memory_space=pltpu.MemorySpace.VMEM),
    )(x2d.astype(jnp.bfloat16), w_qkv.astype(jnp.bfloat16), mask_bias)

    # Columns >= H are exactly zero (zero-padded V weight columns); slice them off.
    return out_padded[:, :H].reshape(B, T, H).astype(x.dtype)


def head_reference(x, w_key, w_query, w_value):
    """Pure-JAX f32 reference matching the PyTorch forward exactly."""
    B, T, C = x.shape
    k = x @ w_key.T
    q = x @ w_query.T
    v = x @ w_value.T
    wei = (q @ jnp.swapaxes(k, -2, -1)) * (C ** -0.5)
    tril = jnp.tril(jnp.ones((T, T), dtype=bool))
    wei = jnp.where(tril, wei, -jnp.inf)
    wei = jax.nn.softmax(wei, axis=-1)
    return wei @ v


if __name__ == "__main__":
    key = jax.random.PRNGKey(0)
    k_x, k_wk, k_wq, k_wv = jax.random.split(key, 4)

    B, T, C = 2, block_size, n_embd  # (2, 8, 32)
    x = jax.random.normal(k_x, (B, T, C), dtype=jnp.float32)

    # Deterministic nn.Linear-style init: uniform(-1/sqrt(fan_in), 1/sqrt(fan_in)).
    bound = 1.0 / (n_embd ** 0.5)
    w_key = jax.random.uniform(k_wk, (head_size, n_embd), jnp.float32, -bound, bound)
    w_query = jax.random.uniform(k_wq, (head_size, n_embd), jnp.float32, -bound, bound)
    w_value = jax.random.uniform(k_wv, (head_size, n_embd), jnp.float32, -bound, bound)

    out = head_forward(x, w_key, w_query, w_value)
    out = jax.block_until_ready(out)

    ref = head_reference(x, w_key, w_query, w_value)
    assert out.shape == (B, T, head_size)
    # Tolerance covers bf16 MXU operands (f32 accumulation) and the EUP approx-reciprocal
    # in the softmax denominator; observed deviation is ~1e-2 absolute at most.
    assert jnp.allclose(out, ref, atol=3e-2, rtol=3e-2), "mismatch vs reference"

    print("KERNEL_OK")
</pallas_src>

<mosaic_0001>
module attributes {stable_mosaic.version = 11 : i64} {
  func.func @_head_kernel(%arg0: memref<16x32xbf16, #tpu.memory_space<vmem>>, %arg1: memref<32x384xbf16, #tpu.memory_space<vmem>>, %arg2: memref<16x16xf32, #tpu.memory_space<vmem>>, %arg3: memref<16x128xf32, #tpu.memory_space<vmem>>) attributes {dimension_semantics = [], scalar_prefetch = 0 : i64, scratch_operands = 0 : i64, tpu.core_type = #tpu.core_type<tc>} {
    %c0 = arith.constant 0 : index
    %c0_0 = arith.constant 0 : index
    %0 = vector.load %arg0[%c0, %c0_0] : memref<16x32xbf16, #tpu.memory_space<vmem>>, vector<16x32xbf16>
    %c0_1 = arith.constant 0 : index
    %c0_2 = arith.constant 0 : index
    %1 = vector.load %arg1[%c0_1, %c0_2] : memref<32x384xbf16, #tpu.memory_space<vmem>>, vector<32x384xbf16>
    %cst = arith.constant dense<0.000000e+00> : vector<16x384xf32>
    %2 = tpu.matmul %0, %1, %cst {dimension_numbers = #tpu.dot_dimension_numbers<[1], [0], [0], [1], [0, 0, 1, 1], [], []>} : vector<16x32xbf16>, vector<32x384xbf16>, vector<16x384xf32> -> vector<16x384xf32>
    %3 = arith.truncf %2 : vector<16x384xf32> to vector<16x384xbf16>
    %4 = vector.extract_strided_slice %3 {offsets = [0, 0], sizes = [16, 128], strides = [1, 1]} : vector<16x384xbf16> to vector<16x128xbf16>
    %5 = vector.extract_strided_slice %3 {offsets = [0, 128], sizes = [16, 128], strides = [1, 1]} : vector<16x384xbf16> to vector<16x128xbf16>
    %6 = vector.extract_strided_slice %3 {offsets = [0, 256], sizes = [16, 128], strides = [1, 1]} : vector<16x384xbf16> to vector<16x128xbf16>
    %cst_3 = arith.constant dense<0.000000e+00> : vector<16x16xf32>
    %7 = tpu.matmul %5, %4, %cst_3 {dimension_numbers = #tpu.dot_dimension_numbers<[1], [1], [0], [0], [0, 0, 1, 0], [], []>} : vector<16x128xbf16>, vector<16x128xbf16>, vector<16x16xf32> -> vector<16x16xf32>
    %cst_4 = arith.constant 0.176776692 : f32
    %8 = vector.broadcast %cst_4 : f32 to vector<16x16xf32>
    %9 = arith.mulf %7, %8 : vector<16x16xf32>
    %c0_5 = arith.constant 0 : index
    %c0_6 = arith.constant 0 : index
    %10 = vector.load %arg2[%c0_5, %c0_6] : memref<16x16xf32, #tpu.memory_space<vmem>>, vector<16x16xf32>
    %11 = arith.addf %9, %10 : vector<16x16xf32>
    %cst_7 = arith.constant dense<0xFF800000> : vector<16xf32>
    %12 = vector.multi_reduction <maximumf>, %11, %cst_7 [1] : vector<16x16xf32> to vector<16xf32>
    %13 = vector.shape_cast %12 : vector<16xf32> to vector<16x1xf32>
    %14 = vector.broadcast %13 : vector<16x1xf32> to vector<16x16xf32>
    %15 = arith.subf %11, %14 : vector<16x16xf32>
    %16 = math.exp %15 : vector<16x16xf32>
    %cst_8 = arith.constant dense<0.000000e+00> : vector<16xf32>
    %17 = vector.multi_reduction <add>, %16, %cst_8 [1] : vector<16x16xf32> to vector<16xf32>
    %18 = vector.shape_cast %17 : vector<16xf32> to vector<16x1xf32>
    %19 = tpu.reciprocal %18 {approx = true} : vector<16x1xf32> -> vector<16x1xf32>
    %20 = vector.broadcast %19 : vector<16x1xf32> to vector<16x16xf32>
    %21 = arith.mulf %16, %20 : vector<16x16xf32>
    %22 = arith.truncf %21 : vector<16x16xf32> to vector<16x16xbf16>
    %cst_9 = arith.constant dense<0.000000e+00> : vector<16x128xf32>
    %23 = tpu.matmul %22, %6, %cst_9 {dimension_numbers = #tpu.dot_dimension_numbers<[1], [0], [0], [1], [0, 0, 1, 1], [], []>} : vector<16x16xbf16>, vector<16x128xbf16>, vector<16x128xf32> -> vector<16x128xf32>
    %c0_10 = arith.constant 0 : index
    %c0_11 = arith.constant 0 : index
    %24 = vector.load %arg3[%c0_10, %c0_11] : memref<16x128xf32, #tpu.memory_space<vmem>>, vector<16x128xf32>
    tpu.vector_store %arg3[%c0_10, %c0_11], %23 {strides = array<i32>} : memref<16x128xf32, #tpu.memory_space<vmem>>, vector<16x128xf32>,
    return
  }
}

</mosaic_0001>

<llo_original>
// kernel: tpu_custom_call.1
$region0: #{tpu_custom_call.1}
  #allocation0 [shape = 'u32[]', space=smem, size = 0x4, offset = 0x4, fixed_abs, tag = 'smem constant byte address 0x4 - core index']
  #allocation1 [shape = 'u32[144,128]{1,0:T(1,128)}', space=vmem, size = 0x12000, scoped, tag = 'internal scratch']
  %s0 = inlined_call_operand.hbm [shape: bf16[16,32], index: 0, kind: input, shape index: {}]
  %s1 = inlined_call_operand.hbm [shape: bf16[32,384], index: 1, kind: input, shape index: {}]
  %s2 = inlined_call_operand.hbm [shape: f32[16,16], index: 2, kind: input, shape index: {}]
  %s3 = inlined_call_operand.hbm [shape: f32[16,128], index: 3, kind: output, shape index: {}]
  %s4 = sld [smem:[#allocation0]]
  $region34: #{tpu_custom_call.1} parent=0
    _
  %s6 = ssub.s32 1, %s4
  %s7 = scalar_select 0, %s6, %s4
  $region1: #{tpu_custom_call.1} parent=0
    #allocation2 [shape = 'u8[4096]{0}', space=vmem, size = 0x1000, scoped, tag = 'input window, operand 0, single buffered']
    #allocation3 [shape = 's32[1]{0}', space=sflag, size = 0x4, scoped, tag = 'scoped memory for tpu_custom_call.1']
    #allocation4 [shape = 's32[1]{0}', space=sflag, size = 0x4, scoped, tag = 'scoped memory for tpu_custom_call.1']
    #allocation5 [shape = 'u8[24576]{0}', space=vmem, size = 0x6000, scoped, tag = 'input window, operand 1, single buffered']
    #allocation6 [shape = 's32[1]{0}', space=sflag, size = 0x4, scoped, tag = 'scoped memory for tpu_custom_call.1']
    #allocation7 [shape = 'u8[8192]{0}', space=vmem, size = 0x2000, scoped, tag = 'input window, operand 2, single buffered']
    #allocation8 [shape = 'u8[8192]{0}', space=vmem, size = 0x2000, scoped, tag = 'output window, operand 0, single buffered']
    %8 = vsyncpa [#allocation3], 0
    %9 = vsyncpa [#allocation6], 0
    %10 = vsyncpa [#allocation4], 0
    // Predicated region
    $region2: #{tpu_custom_call.1} parent=1 // pred_check
      _
    $region3: #{tpu_custom_call.1} parent=1 // pred_check_branch
      %12 = sbr.rel (0) target = $region5
    $region4: #{tpu_custom_call.1} parent=1 // pred_region
      %s14 = ssub.s32 128, 128
      %15 = vsyncadd [#allocation3], %s14
      %s16 = sshll.u32 [#allocation2], 4
      %s17 = int_to_ptr.vmem [resolvable:$true] %s16
      %22 = dma.hbm_to_vmem [thread:$0]  %s0, 128, %s17, [#allocation3], 64, 64, 4
    $region5: #{tpu_custom_call.1} parent=1 // pred_fallthru
      _
    // Predicated region
    $region6: #{tpu_custom_call.1} parent=1 // pred_check
      _
    $region7: #{tpu_custom_call.1} parent=1 // pred_check_branch
      %24 = sbr.rel (0) target = $region9
    $region8: #{tpu_custom_call.1} parent=1 // pred_region
      %s26 = ssub.s32 768, 768
      %27 = vsyncadd [#allocation6], %s26
      %s28 = sshll.u32 [#allocation5], 4
      %s29 = int_to_ptr.vmem [resolvable:$true] %s28
      %34 = dma.hbm_to_vmem [thread:$0]  %s1, 768, %s29, [#allocation6], 192, 192, 12
    $region9: #{tpu_custom_call.1} parent=1 // pred_fallthru
      _
    // Predicated region
    $region10: #{tpu_custom_call.1} parent=1 // pred_check
      _
    $region11: #{tpu_custom_call.1} parent=1 // pred_check_branch
      %36 = sbr.rel (0) target = $region13
    $region12: #{tpu_custom_call.1} parent=1 // pred_region
      %s38 = ssub.s32 256, 256
      %39 = vsyncadd [#allocation6], %s38
      %s40 = sshll.u32 [#allocation7], 4
      %s41 = int_to_ptr.vmem [resolvable:$true] %s40
      %46 = dma.hbm_to_vmem [thread:$0]  %s2, 256, %s41, [#allocation6], 128, 128, 8
    $region13: #{tpu_custom_call.1} parent=1 // pred_fallthru
      _
    // Predicated region
    $region14: #{tpu_custom_call.1} parent=1 // pred_check
      _
    $region15: #{tpu_custom_call.1} parent=1 // pred_check_branch
      %48 = sbr.rel (0) target = $region17
    $region16: #{tpu_custom_call.1} parent=1 // pred_region
      %49 = dma.done [#allocation3], 128
    $region17: #{tpu_custom_call.1} parent=1 // pred_fallthru
      _
    // Predicated region
    $region18: #{tpu_custom_call.1} parent=1 // pred_check
      _
    $region19: #{tpu_custom_call.1} parent=1 // pred_check_branch
      %51 = sbr.rel (0) target = $region21
    $region20: #{tpu_custom_call.1} parent=1 // pred_region
      %52 = dma.done [#allocation6], 768
    $region21: #{tpu_custom_call.1} parent=1 // pred_fallthru
      _
    // Predicated region
    $region22: #{tpu_custom_call.1} parent=1 // pred_check
      _
    $region23: #{tpu_custom_call.1} parent=1 // pred_check_branch
      %54 = sbr.rel (0) target = $region25
    $region24: #{tpu_custom_call.1} parent=1 // pred_region
      %55 = dma.done [#allocation6], 256
    $region25: #{tpu_custom_call.1} parent=1 // pred_fallthru
      _
    %v57 = vld [vmem:[#allocation2] sm:$0xf]
    %v58 = vld [vmem:[#allocation2 + $0x4] sm:$0xf]
    %v59 = vld [vmem:[#allocation5] sm:$0xff]
    %v60 = vld [vmem:[#allocation5 + $0x8] sm:$0xf]
    %v61 = vld [vmem:[#allocation5 + $0xc] sm:$0xff]
    %v62 = vld [vmem:[#allocation5 + $0x14] sm:$0xf]
    %v63 = vld [vmem:[#allocation5 + $0x18] sm:$0xff]
    %v64 = vld [vmem:[#allocation5 + $0x20] sm:$0xf]
    %v65 = vld [vmem:[#allocation5 + $0x24] sm:$0xff]
    %v66 = vld [vmem:[#allocation5 + $0x2c] sm:$0xf]
    %v69 = vunpack.c.l.b16 %v57
    %v70 = vunpack.c.l.b16 %v58
    %v71 = vpack.c.b16 %v70, %v69
    %v80 = vunpack.c.l.b16 %v59
    %v81 = vunpack.c.h.b16 %v59
    %v82 = vunpack.c.l.b16 %v60
    %v83 = vunpack.c.l.b16 %v61
    %v84 = vunpack.c.h.b16 %v61
    %v85 = vunpack.c.l.b16 %v62
    %v86 = vunpack.c.l.b16 %v63
    %v87 = vunpack.c.h.b16 %v63
    %v88 = vunpack.c.l.b16 %v64
    %v89 = vunpack.c.l.b16 %v65
    %v90 = vunpack.c.h.b16 %v65
    %v91 = vunpack.c.l.b16 %v66
    %v92 = vpack.c.b16 %v83, %v80
    %v93 = vpack.c.b16 %v84, %v81
    %v94 = vpack.c.b16 %v85, %v82
    %v95 = vpack.c.b16 %v89, %v86
    %v96 = vpack.c.b16 %v90, %v87
    %v97 = vpack.c.b16 %v91, %v88
    %vm104 = vcmask 261120
    %v106 = vsel %vm104, %v71, 0
    %108 = vmatprep.subr.bf16.mxu0 %v93
    %109 = vmatpush1.bf16.msra.mxu0 %v92
    %110 = vmatprep.subr.bf16.mxu0 %v96
    %111 = vmatpush1.bf16.msra.mxu0 %v95
    %112 = vmatprep.subr.bf16.mxu0 0
    %113 = vmatpush1.bf16.msra.mxu0 0
    %114 = vmatprep.subr.bf16.mxu0 0
    %115 = vmatpush1.bf16.msra.mxu0 0
    %116 = vmatprep.subr.bf16.mxu0 0
    %117 = vmatpush1.bf16.msra.mxu0 0
    %118 = vmatprep.subr.bf16.mxu0 0
    %119 = vmatpush1.bf16.msra.mxu0 0
    %120 = vmatprep.subr.bf16.mxu0 0
    %121 = vmatpush1.bf16.msra.mxu0 0
    %122 = vmatprep.subr.bf16.mxu0 0
    %123 = vmatpush1.bf16.msra.mxu0 0
    %124 = vmatprep.subr.bf16.mxu0 0
    %125 = vmatpush1.bf16.msra.mxu0 0
    %126 = vmatprep.subr.bf16.mxu0 0
    %127 = vmatpush1.bf16.msra.mxu0 0
    %128 = vmatprep.subr.bf16.mxu0 0
    %129 = vmatpush1.bf16.msra.mxu0 0
    %130 = vmatprep.subr.bf16.mxu0 0
    %131 = vmatpush1.bf16.msra.mxu0 0
    %132 = vmatprep.subr.bf16.mxu0 0
    %133 = vmatpush1.bf16.msra.mxu0 0
    %134 = vmatprep.subr.bf16.mxu0 0
    %135 = vmatpush1.bf16.msra.mxu0 0
    %136 = vmatprep.subr.bf16.mxu0 0
    %137 = vmatpush1.bf16.msra.mxu0 0
    %138 = vmatprep.subr.bf16.mxu0 0
    %139 = vmatpush1.bf16.msra.mxu0 0
    %140 = vmatprep.mubr.bf16.mxu0 0
    %141 = vmatmul.mubr.bf16.gmra.mrb[0].mxu0 %v106
    %v142 = vpop.f32.mrb[0].mxu0
    %v143 = vadd.f32 0.0, %v142
    %v144 = vpop.f32.mrb[0].mxu0
    %v145 = vadd.f32 0.0, %v144
    %v146 = vpop.f32.mrb[0].mxu0
    %v147 = vadd.f32 0.0, %v146
    %v148 = vpop.f32.mrb[0].mxu0
    %v149 = vadd.f32 0.0, %v148
    %150 = vdwg.mxu0
    %151 = vmatprep.subr.bf16.mxu0 0
    %152 = vmatpush1.bf16.msra.mxu0 %v94
    %153 = vmatprep.subr.bf16.mxu0 0
    %154 = vmatpush1.bf16.msra.mxu0 %v97
    %155 = vmatprep.subr.bf16.mxu0 0
    %156 = vmatpush1.bf16.msra.mxu0 0
    %157 = vmatprep.subr.bf16.mxu0 0
    %158 = vmatpush1.bf16.msra.mxu0 0
    %159 = vmatprep.subr.bf16.mxu0 0
    %160 = vmatpush1.bf16.msra.mxu0 0
    %161 = vmatprep.subr.bf16.mxu0 0
    %162 = vmatpush1.bf16.msra.mxu0 0
    %163 = vmatprep.subr.bf16.mxu0 0
    %164 = vmatpush1.bf16.msra.mxu0 0
    %165 = vmatprep.subr.bf16.mxu0 0
    %166 = vmatpush1.bf16.msra.mxu0 0
    %167 = vmatprep.subr.bf16.mxu0 0
    %168 = vmatpush1.bf16.msra.mxu0 0
    %169 = vmatprep.subr.bf16.mxu0 0
    %170 = vmatpush1.bf16.msra.mxu0 0
    %171 = vmatprep.subr.bf16.mxu0 0
    %172 = vmatpush1.bf16.msra.mxu0 0
    %173 = vmatprep.subr.bf16.mxu0 0
    %174 = vmatpush1.bf16.msra.mxu0 0
    %175 = vmatprep.subr.bf16.mxu0 0
    %176 = vmatpush1.bf16.msra.mxu0 0
    %177 = vmatprep.subr.bf16.mxu0 0
    %178 = vmatpush1.bf16.msra.mxu0 0
    %179 = vmatprep.subr.bf16.mxu0 0
    %180 = vmatpush1.bf16.msra.mxu0 0
    %181 = vmatprep.subr.bf16.mxu0 0
    %182 = vmatpush1.bf16.msra.mxu0 0
    %183 = vmatprep.mubr.bf16.mxu0 0
    %184 = vmatmul.mubr.bf16.gmra.mrb[0].mxu0 %v106
    %v185 = vpop.f32.mrb[0].mxu0
    %v186 = vadd.f32 0.0, %v185
    %v187 = vpop.f32.mrb[0].mxu0
    %v188 = vpop.f32.mrb[0].mxu0
    %v189 = vadd.f32 0.0, %v188
    %v190 = vpop.f32.mrb[0].mxu0
    %191 = vdwg.mxu0
    %v192 = vpack.c.bf16 %v147, %v143
    %v193 = vpack.c.bf16 %v149, %v145
    %v194 = vpack.c.bf16 %v189, %v186
    %195 = vmatprep.subr.bf16.mxu0 0
    %196 = vmatpush1.bf16.xpose.msra.mxu0 %v192
    %197 = vmatprep.subr.bf16.mxu0 0
    %198 = vmatpush1.bf16.xpose.msra.mxu0 0
    %199 = vmatprep.subr.bf16.mxu0 0
    %200 = vmatpush1.bf16.xpose.msra.mxu0 0
    %201 = vmatprep.subr.bf16.mxu0 0
    %202 = vmatpush1.bf16.xpose.msra.mxu0 0
    %203 = vmatprep.subr.bf16.mxu0 0
    %204 = vmatpush1.bf16.xpose.msra.mxu0 0
    %205 = vmatprep.subr.bf16.mxu0 0
    %206 = vmatpush1.bf16.xpose.msra.mxu0 0
    %207 = vmatprep.subr.bf16.mxu0 0
    %208 = vmatpush1.bf16.xpose.msra.mxu0 0
    %209 = vmatprep.subr.bf16.mxu0 0
    %210 = vmatpush1.bf16.xpose.msra.mxu0 0
    %211 = vmatprep.subr.bf16.mxu0 0
    %212 = vmatpush1.bf16.xpose.msra.mxu0 0
    %213 = vmatprep.subr.bf16.mxu0 0
    %214 = vmatpush1.bf16.xpose.msra.mxu0 0
    %215 = vmatprep.subr.bf16.mxu0 0
    %216 = vmatpush1.bf16.xpose.msra.mxu0 0
    %217 = vmatprep.subr.bf16.mxu0 0
    %218 = vmatpush1.bf16.xpose.msra.mxu0 0
    %219 = vmatprep.subr.bf16.mxu0 0
    %220 = vmatpush1.bf16.xpose.msra.mxu0 0
    %221 = vmatprep.subr.bf16.mxu0 0
    %222 = vmatpush1.bf16.xpose.msra.mxu0 0
    %223 = vmatprep.subr.bf16.mxu0 0
    %224 = vmatpush1.bf16.xpose.msra.mxu0 0
    %225 = vmatprep.subr.bf16.mxu0 0
    %226 = vmatpush1.bf16.xpose.msra.mxu0 0
    %227 = vmatprep.mubr.bf16.mxu0 0
    %228 = vmatmul.mubr.bf16.gmra.mrb[0].mxu0 %v193
    %v229 = vpop.f32.mrb[0].mxu0
    %v230 = vadd.f32 0.0, %v229
    %v231 = vpop.f32.mrb[0].mxu0
    %v232 = vpop.f32.mrb[0].mxu0
    %v233 = vadd.f32 0.0, %v232
    %v234 = vpop.f32.mrb[0].mxu0
    %235 = vdwg.mxu0
    %v236 = vmul.f32 %v230, 0.17677669
    %v237 = vmul.f32 %v233, 0.17677669
    %v238 = vld [vmem:[#allocation7] sm:$0xff]
    %v239 = vld [vmem:[#allocation7 + $0x8] sm:$0xff]
    %v240 = vadd.f32 %v236, %v238
    %v241 = vadd.f32 %v237, %v239
    %vm242 = vcmask 130048
    %v243 = vsel %vm242, %v240, -inf
    %244 = vmax.xlane.f32.xlu0 %v243
    %v245 = vpop.xlane.xlu0 %244
    %v246 = vsel %vm242, %v241, -inf
    %247 = vmax.xlane.f32.xlu0 %v246
    %v248 = vpop.xlane.xlu0 %247
    %v249 = vsub.f32 %v240, %v245
    %v250 = vsub.f32 %v241, %v248
    %v251 = vmul.f32 %v249, 1.442695
    %v252 = vpow.pop %v251
    %v253 = vmul.f32 %v250, 1.442695
    %v254 = vpow.pop %v253
    %v255 = vsel %vm242, %v252, 0.0
    %256 = vadd.xlane.f32.xlu0 %v255
    %v257 = vpop.xlane.xlu0 %256
    %v258 = vsel %vm242, %v254, 0.0
    %259 = vadd.xlane.f32.xlu0 %v258
    %v260 = vpop.xlane.xlu0 %259
    %v261 = vrcp.pop %v257
    %v262 = vrcp.pop %v260
    %v263 = vmul.f32 %v252, %v261
    %v264 = vmul.f32 %v254, %v262
    %v265 = vpack.c.bf16 %v264, %v263
    %v267 = vsel %vm242, %v265, 0
    %269 = vmatprep.subr.bf16.mxu0 0
    %270 = vmatpush1.bf16.msra.mxu0 %v194
    %271 = vmatprep.subr.bf16.mxu0 0
    %272 = vmatpush1.bf16.msra.mxu0 0
    %273 = vmatprep.subr.bf16.mxu0 0
    %274 = vmatpush1.bf16.msra.mxu0 0
    %275 = vmatprep.subr.bf16.mxu0 0
    %276 = vmatpush1.bf16.msra.mxu0 0
    %277 = vmatprep.subr.bf16.mxu0 0
    %278 = vmatpush1.bf16.msra.mxu0 0
    %279 = vmatprep.subr.bf16.mxu0 0
    %280 = vmatpush1.bf16.msra.mxu0 0
    %281 = vmatprep.subr.bf16.mxu0 0
    %282 = vmatpush1.bf16.msra.mxu0 0
    %283 = vmatprep.subr.bf16.mxu0 0
    %284 = vmatpush1.bf16.msra.mxu0 0
    %285 = vmatprep.subr.bf16.mxu0 0
    %286 = vmatpush1.bf16.msra.mxu0 0
    %287 = vmatprep.subr.bf16.mxu0 0
    %288 = vmatpush1.bf16.msra.mxu0 0
    %289 = vmatprep.subr.bf16.mxu0 0
    %290 = vmatpush1.bf16.msra.mxu0 0
    %291 = vmatprep.subr.bf16.mxu0 0
    %292 = vmatpush1.bf16.msra.mxu0 0
    %293 = vmatprep.subr.bf16.mxu0 0
    %294 = vmatpush1.bf16.msra.mxu0 0
    %295 = vmatprep.subr.bf16.mxu0 0
    %296 = vmatpush1.bf16.msra.mxu0 0
    %297 = vmatprep.subr.bf16.mxu0 0
    %298 = vmatpush1.bf16.msra.mxu0 0
    %299 = vmatprep.subr.bf16.mxu0 0
    %300 = vmatpush1.bf16.msra.mxu0 0
    %301 = vmatprep.mubr.bf16.mxu0 0
    %302 = vmatmul.mubr.bf16.gmra.mrb[0].mxu0 %v267
    %v303 = vpop.f32.mrb[0].mxu0
    %v304 = vadd.f32 0.0, %v303
    %v305 = vpop.f32.mrb[0].mxu0
    %v306 = vpop.f32.mrb[0].mxu0
    %v307 = vadd.f32 0.0, %v306
    %v308 = vpop.f32.mrb[0].mxu0
    %309 = vdwg.mxu0
    %310 = vst [vmem:[#allocation8] sm:$0xff] %v304
    %311 = vst [vmem:[#allocation8 + $0x8] sm:$0xff] %v307
    // Predicated region
    $region26: #{tpu_custom_call.1} parent=1 // pred_check
      _
    $region27: #{tpu_custom_call.1} parent=1 // pred_check_branch
      %313 = sbr.rel (0) target = $region29
    $region28: #{tpu_custom_call.1} parent=1 // pred_region
      %s315 = ssub.s32 256, 256
      %316 = vsyncadd [#allocation4], %s315
      %s317 = sshll.u32 [#allocation8], 4
      %s318 = int_to_ptr.vmem [resolvable:$true] %s317
      %323 = dma.vmem_to_hbm [thread:$0]  %s318, 256, %s3, [#allocation4], 128, 128, 8
    $region29: #{tpu_custom_call.1} parent=1 // pred_fallthru
      _
    // Predicated region
    $region30: #{tpu_custom_call.1} parent=1 // pred_check
      _
    $region31: #{tpu_custom_call.1} parent=1 // pred_check_branch
      %325 = sbr.rel (0) target = $region33
    $region32: #{tpu_custom_call.1} parent=1 // pred_region
      %326 = dma.done [#allocation4], 256
    $region33: #{tpu_custom_call.1} parent=1 // pred_fallthru
      _
    %327 = vsyncpa [#allocation3], 1
    %328 = vsyncpa [#allocation6], 1
    %329 = vsyncpa [#allocation4], 1

</llo_original>
